<compile_context>
chip_gen: v7x
topology: tpu7x:2x2x1
jax: 0.10.0
libtpu: 0.0.40
codegen_flags: <defaults>
</compile_context>

<pallas_src>
import jax
import jax.numpy as jnp
from jax import lax
from jax.experimental import pallas as pl
from jax.experimental.pallas import tpu as pltpu

BN_EPS = 1e-5
DEFAULT_TILE_N = 8192          # lane-aligned; amortizes per-grid-step overhead, fits v7x VMEM
NEG_INF = float("-inf")


def _round_up(x, m):
    return -(-x // m) * m


# --------------------------------------------------------------------------- #
# Pallas kernel factory                                                        #
# --------------------------------------------------------------------------- #
def _make_kernel(layer_counts, scale0_slices, n_points, tile_n, padded_n, n_param_refs):
    """Fused multi-scale channels-first PointNet MLP + running global max-pool."""
    needs_mask = padded_n != n_points
    n_scales = len(layer_counts)

    def kernel(*refs):
        x_ref = refs[0]
        param_refs = refs[1:1 + n_param_refs]
        out_refs = refs[1 + n_param_refs:1 + n_param_refs + n_scales]
        acc_refs = refs[1 + n_param_refs + n_scales:]

        k = pl.program_id(1)
        last_k = pl.num_programs(1) - 1

        x_t = x_ref[0]                                   # (cin_pad, tile) bf16, lane-dense

        # Layer 0, fused across all scales: one (sum_C0, cin_pad) @ (cin_pad, tile) MXU pass.
        w0 = param_refs[0][...]                          # (sum_c0_pad, cin_pad) bf16
        b0 = param_refs[1][...]                          # (sum_c0_pad, 1) f32
        h0 = jnp.dot(w0, x_t, preferred_element_type=jnp.float32) + b0

        # Tail mask over the points (lane) axis, hoisted out of the scale loop.
        if needs_mask:
            pt = k * tile_n + lax.broadcasted_iota(jnp.int32, (1, tile_n), 1)
            valid = pt < n_points                        # (1, tile) lane predicate

        p = 2
        for s in range(n_scales):
            n_layers = layer_counts[s]
            off, c0, c0_pad = scale0_slices[s]

            if n_layers == 1:
                h = h0[off:off + c0]                     # last layer of the MLP: no ReLU
            else:
                h = jnp.maximum(h0[off:off + c0_pad], 0.0)
                for i in range(1, n_layers):
                    w = param_refs[p][...]; p += 1       # (cout, cin_prev[_pad]) bf16
                    b = param_refs[p][...]; p += 1       # (cout, 1) f32
                    h = jnp.dot(w, h.astype(jnp.bfloat16),
                                preferred_element_type=jnp.float32) + b
                    if i < n_layers - 1:
                        h = jnp.maximum(h, 0.0)

            if needs_mask:
                h = jnp.where(valid, h, NEG_INF)
            tile_max = jnp.max(h, axis=1, keepdims=True)  # (feat_size_s, 1)

            acc = acc_refs[s]

            @pl.when(k == 0)
            def _init(acc=acc, tile_max=tile_max):
                acc[...] = tile_max

            @pl.when(k > 0)
            def _update(acc=acc, tile_max=tile_max):
                acc[...] = jnp.maximum(acc[...], tile_max)

            @pl.when(k == last_k)
            def _write(out_ref=out_refs[s], acc=acc):
                out_ref[0] = acc[...]

    return kernel


# --------------------------------------------------------------------------- #
# Wrapper: PointNet2SetAbstraction.forward (group-all case)                    #
# --------------------------------------------------------------------------- #
def pointnet2_set_abstraction(xyz, features, scales_params,
                              use_xyz_feature=True, tile_n=DEFAULT_TILE_N):
    """Group-all (num_points_out=None) forward path.

    xyz: (B, N, 3) f32; features: (B, C, N) f32 or None.
    scales_params: list (per scale) of per-layer (W (Cin, Cout), scale (1, Cout),
      shift (1, Cout)); layer-0 Cin = (3 if use_xyz_feature else 0) + C.
    Returns (new_xyz=None, new_features (B, sum feat_sizes)).
    """
    has_features = features is not None
    assert use_xyz_feature or has_features, "need at least one of xyz / features"
    B, N, _ = xyz.shape

    # Points-axis tiling: keep the tile lane-aligned (multiple of 128) when tiling.
    # TODO(synk): cap a tile sweep at ~8192 on v7x (64 MiB VMEM); 16384 is fine on v5e/v6e.
    if N <= tile_n:
        tile = N
        padded_n = N
    else:
        tile = max(128, (tile_n // 128) * 128)
        padded_n = _round_up(N, tile)

    # Lane-dense channels-first input: (B, cin_pad, padded_n) bf16, built once in the wrapper.
    parts = []
    if use_xyz_feature:
        parts.append(jnp.transpose(xyz.astype(jnp.float32), (0, 2, 1)))   # (B, 3, N)
    if has_features:
        parts.append(features.astype(jnp.float32))                        # (B, C, N)
    x_cat = parts[0] if len(parts) == 1 else jnp.concatenate(parts, axis=1)
    cin = x_cat.shape[1]
    cin_pad = _round_up(cin, 8)
    x_cat = jnp.pad(x_cat, ((0, 0), (0, cin_pad - cin), (0, padded_n - N)))
    x_cat = x_cat.astype(jnp.bfloat16)

    # Parameters: fold the per-channel BN/bias scale into W (exact: (h@W)*s == h@(W*s)),
    # pre-transpose to (Cout, Cin) so every in-kernel dot is canonical (M,K)@(K,N), and fuse
    # all scales' layer-0 weights/shifts along the output-channel axis (shared input tile).
    w0_blocks, b0_blocks, scale0_slices = [], [], []
    rest_params = []
    layer_counts, feat_sizes = [], []
    off = 0
    for params in scales_params:
        layer_counts.append(len(params))
        feat_sizes.append(params[-1][0].shape[1])

        w, sc, sh = params[0]
        assert w.shape[0] == cin, "layer-0 in_channels mismatch"
        c0 = w.shape[1]
        c0_pad = _round_up(c0, 8)
        wt = (w.astype(jnp.float32) * sc.astype(jnp.float32)).T            # (c0, cin)
        wt = jnp.pad(wt, ((0, c0_pad - c0), (0, cin_pad - cin)))
        b = jnp.pad(sh.astype(jnp.float32).reshape(c0, 1), ((0, c0_pad - c0), (0, 0)))
        w0_blocks.append(wt)
        b0_blocks.append(b)
        scale0_slices.append((off, c0, c0_pad))
        off += c0_pad

        prev_pad = c0_pad
        for (w, sc, sh) in params[1:]:
            cin_l, cout_l = w.shape
            wt = (w.astype(jnp.float32) * sc.astype(jnp.float32)).T        # (cout_l, cin_l)
            wt = jnp.pad(wt, ((0, 0), (0, prev_pad - cin_l))).astype(jnp.bfloat16)
            rest_params.append(wt)
            rest_params.append(sh.astype(jnp.float32).reshape(cout_l, 1))
            prev_pad = cout_l

    w0_fused = jnp.concatenate(w0_blocks, axis=0).astype(jnp.bfloat16)     # (sum_c0_pad, cin_pad)
    b0_fused = jnp.concatenate(b0_blocks, axis=0)                          # (sum_c0_pad, 1)
    flat_params = [w0_fused, b0_fused] + rest_params

    inputs = [x_cat] + flat_params
    in_specs = [pl.BlockSpec((1, cin_pad, tile), lambda b, k: (b, 0, k))]
    for prm in flat_params:
        in_specs.append(pl.BlockSpec(prm.shape, lambda b, k, nd=prm.ndim: (0,) * nd))

    out_shape = tuple(jax.ShapeDtypeStruct((B, fs, 1), jnp.float32) for fs in feat_sizes)
    out_specs = [pl.BlockSpec((1, fs, 1), lambda b, k: (b, 0, 0)) for fs in feat_sizes]
    scratch_shapes = [pltpu.VMEM((fs, 1), jnp.float32) for fs in feat_sizes]

    kernel = _make_kernel(tuple(layer_counts), tuple(scale0_slices),
                          N, tile, padded_n, len(flat_params))

    # TODO(synk): when B == 1 on v7x (2 TensorCores/chip), split the N axis into a leading
    # "parallel" grid dim with per-core partial-max accumulators to keep both cores busy.
    outs = pl.pallas_call(
        kernel,
        out_shape=out_shape,
        grid_spec=pltpu.PrefetchScalarGridSpec(
            num_scalar_prefetch=0,
            grid=(B, padded_n // tile),
            in_specs=in_specs,
            out_specs=out_specs,
            scratch_shapes=scratch_shapes,
        ),
        compiler_params=pltpu.CompilerParams(
            dimension_semantics=("parallel", "arbitrary"),
            vmem_limit_bytes=48 * 1024 * 1024,
        ),
    )(*inputs)

    feats = [o[:, :, 0] for o in outs]
    new_features = feats[0] if len(feats) == 1 else jnp.concatenate(feats, axis=1)
    return None, new_features


# --------------------------------------------------------------------------- #
# Pure-JAX references for correctness checking                                 #
# --------------------------------------------------------------------------- #
def _grouped_input(xyz, features, use_xyz_feature):
    parts = []
    if use_xyz_feature:
        parts.append(xyz)
    if features is not None:
        parts.append(jnp.transpose(features, (0, 2, 1)))
    return jnp.concatenate(parts, axis=-1).astype(jnp.float32)


def pointnet2_set_abstraction_ref_f32(xyz, features, scales_params, use_xyz_feature=True):
    """Exact f32 math matching the PyTorch eval-mode module."""
    grouped = _grouped_input(xyz, features, use_xyz_feature)
    outs = []
    for params in scales_params:
        h = grouped
        for i, (w, s, t) in enumerate(params):
            h = jnp.einsum("bnc,cd->bnd", h, w) * s[None] + t[None]
            if i < len(params) - 1:
                h = jnp.maximum(h, 0.0)
        outs.append(jnp.max(h, axis=1))
    return None, jnp.concatenate(outs, axis=1)


def pointnet2_set_abstraction_ref_bf16(xyz, features, scales_params, use_xyz_feature=True):
    """Same folded-scale bf16-matmul recipe as the kernel (tight-tolerance reference)."""
    grouped = _grouped_input(xyz, features, use_xyz_feature)
    outs = []
    for params in scales_params:
        h = grouped
        for i, (w, s, t) in enumerate(params):
            wf = (w * s).astype(jnp.bfloat16)
            h = jnp.einsum("bnc,cd->bnd", h.astype(jnp.bfloat16), wf,
                           preferred_element_type=jnp.float32) + t[None]
            if i < len(params) - 1:
                h = jnp.maximum(h, 0.0)
        outs.append(jnp.max(h, axis=1))
    return None, jnp.concatenate(outs, axis=1)


# --------------------------------------------------------------------------- #
# Deterministic parameter construction (Conv1d bias + eval-mode BatchNorm1d)   #
# --------------------------------------------------------------------------- #
def make_pointnet_params(key, in_channels, feat_size, layer_dims):
    dims = [in_channels] + list(layer_dims) + [feat_size]
    params = []
    for i in range(len(dims) - 1):
        cin, cout = dims[i], dims[i + 1]
        key, k1, k2, k3, k4, k5, k6 = jax.random.split(key, 7)
        w = jax.random.normal(k1, (cin, cout), jnp.float32) / jnp.sqrt(float(cin))
        bias = 0.1 * jax.random.normal(k2, (cout,), jnp.float32)
        gamma = 1.0 + 0.1 * jax.random.normal(k3, (cout,), jnp.float32)
        beta = 0.1 * jax.random.normal(k4, (cout,), jnp.float32)
        run_mean = 0.1 * jax.random.normal(k5, (cout,), jnp.float32)
        run_var = 1.0 + 0.1 * jax.random.uniform(k6, (cout,), jnp.float32)
        # eval-mode BatchNorm1d fused with the conv bias into one per-channel affine
        scale = gamma / jnp.sqrt(run_var + BN_EPS)
        shift = scale * (bias - run_mean) + beta
        params.append((w, scale.reshape(1, cout), shift.reshape(1, cout)))
    return params, key


if __name__ == "__main__":
    # Module config: PointNet2SetAbstraction(num_points_out=None, pointnet_in_features=4,
    #                pointnet_layer_dims_list=[[32, 64, 128]], use_xyz_feature=True), eval mode.
    B, N = 2, 200
    pointnet_in_features = 4
    pointnet_layer_dims_list = [[32, 64, 128]]
    use_xyz_feature = True
    pointnet_in_channels = pointnet_in_features + (3 if use_xyz_feature else 0)

    key = jax.random.PRNGKey(0)
    key, kx, kf = jax.random.split(key, 3)
    xyz = jax.random.normal(kx, (B, N, 3), jnp.float32)                          # (B, N, 3)
    features = jax.random.normal(kf, (B, pointnet_in_features, N), jnp.float32)  # (B, C, N)

    scales_params = []
    for layer_dims in pointnet_layer_dims_list:
        p, key = make_pointnet_params(key, pointnet_in_channels, layer_dims[-1], layer_dims[:-1])
        scales_params.append(p)

    _, ref_bf16 = pointnet2_set_abstraction_ref_bf16(xyz, features, scales_params, use_xyz_feature)
    _, ref_f32 = pointnet2_set_abstraction_ref_f32(xyz, features, scales_params, use_xyz_feature)
    ref_bf16 = jax.block_until_ready(ref_bf16)
    ref_f32 = jax.block_until_ready(ref_f32)

    # 1) Default large-tile path: single N tile per batch element.
    new_xyz, feat_big = pointnet2_set_abstraction(
        xyz, features, scales_params, use_xyz_feature=use_xyz_feature)
    feat_big = jax.block_until_ready(feat_big)

    # 2) Tiled-N path (tile_n=128): exercises the running-max accumulator and the
    #    padded-tail lane mask (N=200 -> padded to 256, grid k dim = 2).
    _, feat_tiled = pointnet2_set_abstraction(
        xyz, features, scales_params, use_xyz_feature=use_xyz_feature, tile_n=128)
    feat_tiled = jax.block_until_ready(feat_tiled)

    out_dim = sum(l[-1] for l in pointnet_layer_dims_list)
    assert new_xyz is None
    assert feat_big.shape == (B, out_dim) and feat_tiled.shape == (B, out_dim)
    for name, got in (("big-tile", feat_big), ("tiled", feat_tiled)):
        # Tight check vs a reference using the identical bf16-matmul recipe.
        assert jnp.allclose(got, ref_bf16, atol=2e-3, rtol=2e-3), f"{name}: mismatch vs bf16 ref"
        # Loose check vs exact f32 PyTorch-equivalent math (bf16 MXU rounding tolerance).
        assert jnp.allclose(got, ref_f32, atol=5e-2, rtol=5e-2), f"{name}: mismatch vs f32 ref"

    print("KERNEL_OK")
</pallas_src>

<mosaic_0001>
module attributes {stable_mosaic.version = 11 : i64} {
  func.func @kernel(%arg0: i32, %arg1: i32, %arg2: memref<1x8x200xbf16, #tpu.memory_space<vmem>>, %arg3: memref<32x8xbf16, #tpu.memory_space<vmem>>, %arg4: memref<32x1xf32, #tpu.memory_space<vmem>>, %arg5: memref<64x32xbf16, #tpu.memory_space<vmem>>, %arg6: memref<64x1xf32, #tpu.memory_space<vmem>>, %arg7: memref<128x64xbf16, #tpu.memory_space<vmem>>, %arg8: memref<128x1xf32, #tpu.memory_space<vmem>>, %arg9: memref<1x128x1xf32, #tpu.memory_space<vmem>>, %arg10: memref<128x1xf32, #tpu.memory_space<vmem>>) attributes {dimension_semantics = [#tpu.dimension_semantics<parallel>, #tpu.dimension_semantics<arbitrary>], iteration_bounds = array<i64: 2, 1>, scalar_prefetch = 0 : i64, scratch_operands = 1 : i64, tpu.core_type = #tpu.core_type<tc>, window_params = [{transform_indices = @transform_0, window_bounds = array<i64: 1, 8, 200>}, {pipeline_mode = #tpu.pipeline_mode<synchronous>, transform_indices = @transform_1, window_bounds = array<i64: 32, 8>}, {pipeline_mode = #tpu.pipeline_mode<synchronous>, transform_indices = @transform_2, window_bounds = array<i64: 32, 1>}, {pipeline_mode = #tpu.pipeline_mode<synchronous>, transform_indices = @transform_3, window_bounds = array<i64: 64, 32>}, {pipeline_mode = #tpu.pipeline_mode<synchronous>, transform_indices = @transform_4, window_bounds = array<i64: 64, 1>}, {pipeline_mode = #tpu.pipeline_mode<synchronous>, transform_indices = @transform_5, window_bounds = array<i64: 128, 64>}, {pipeline_mode = #tpu.pipeline_mode<synchronous>, transform_indices = @transform_6, window_bounds = array<i64: 128, 1>}, {transform_indices = @transform_7, window_bounds = array<i64: 1, 128, 1>}]} {
    %c0 = arith.constant 0 : index
    %c0_0 = arith.constant 0 : index
    %c0_1 = arith.constant 0 : index
    %0 = vector.load %arg2[%c0, %c0_0, %c0_1] : memref<1x8x200xbf16, #tpu.memory_space<vmem>>, vector<1x8x200xbf16>
    %1 = vector.shape_cast %0 : vector<1x8x200xbf16> to vector<8x200xbf16>
    %c0_2 = arith.constant 0 : index
    %c0_3 = arith.constant 0 : index
    %2 = vector.load %arg3[%c0_2, %c0_3] : memref<32x8xbf16, #tpu.memory_space<vmem>>, vector<32x8xbf16>
    %c0_4 = arith.constant 0 : index
    %c0_5 = arith.constant 0 : index
    %3 = vector.load %arg4[%c0_4, %c0_5] : memref<32x1xf32, #tpu.memory_space<vmem>>, vector<32x1xf32>
    %cst = arith.constant dense<0.000000e+00> : vector<32x200xf32>
    %4 = tpu.matmul %2, %1, %cst {dimension_numbers = #tpu.dot_dimension_numbers<[1], [0], [0], [1], [0, 0, 1, 1], [], []>} : vector<32x8xbf16>, vector<8x200xbf16>, vector<32x200xf32> -> vector<32x200xf32>
    %5 = vector.broadcast %3 : vector<32x1xf32> to vector<32x200xf32>
    %6 = arith.addf %4, %5 : vector<32x200xf32>
    %cst_6 = arith.constant 0.000000e+00 : f32
    %7 = vector.broadcast %cst_6 : f32 to vector<32x200xf32>
    %8 = arith.maximumf %6, %7 : vector<32x200xf32>
    %c0_7 = arith.constant 0 : index
    %c0_8 = arith.constant 0 : index
    %9 = vector.load %arg5[%c0_7, %c0_8] : memref<64x32xbf16, #tpu.memory_space<vmem>>, vector<64x32xbf16>
    %c0_9 = arith.constant 0 : index
    %c0_10 = arith.constant 0 : index
    %10 = vector.load %arg6[%c0_9, %c0_10] : memref<64x1xf32, #tpu.memory_space<vmem>>, vector<64x1xf32>
    %11 = arith.truncf %8 : vector<32x200xf32> to vector<32x200xbf16>
    %cst_11 = arith.constant dense<0.000000e+00> : vector<64x200xf32>
    %12 = tpu.matmul %9, %11, %cst_11 {dimension_numbers = #tpu.dot_dimension_numbers<[1], [0], [0], [1], [0, 0, 1, 1], [], []>} : vector<64x32xbf16>, vector<32x200xbf16>, vector<64x200xf32> -> vector<64x200xf32>
    %13 = vector.broadcast %10 : vector<64x1xf32> to vector<64x200xf32>
    %14 = arith.addf %12, %13 : vector<64x200xf32>
    %cst_12 = arith.constant 0.000000e+00 : f32
    %15 = vector.broadcast %cst_12 : f32 to vector<64x200xf32>
    %16 = arith.maximumf %14, %15 : vector<64x200xf32>
    %c0_13 = arith.constant 0 : index
    %c0_14 = arith.constant 0 : index
    %17 = vector.load %arg7[%c0_13, %c0_14] : memref<128x64xbf16, #tpu.memory_space<vmem>>, vector<128x64xbf16>
    %c0_15 = arith.constant 0 : index
    %c0_16 = arith.constant 0 : index
    %18 = vector.load %arg8[%c0_15, %c0_16] : memref<128x1xf32, #tpu.memory_space<vmem>>, vector<128x1xf32>
    %19 = arith.truncf %16 : vector<64x200xf32> to vector<64x200xbf16>
    %cst_17 = arith.constant dense<0.000000e+00> : vector<128x200xf32>
    %20 = tpu.matmul %17, %19, %cst_17 {dimension_numbers = #tpu.dot_dimension_numbers<[1], [0], [0], [1], [0, 0, 1, 1], [], []>} : vector<128x64xbf16>, vector<64x200xbf16>, vector<128x200xf32> -> vector<128x200xf32>
    %21 = vector.broadcast %18 : vector<128x1xf32> to vector<128x200xf32>
    %22 = arith.addf %20, %21 : vector<128x200xf32>
    %cst_18 = arith.constant dense<0xFF800000> : vector<128xf32>
    %23 = vector.multi_reduction <maximumf>, %22, %cst_18 [1] : vector<128x200xf32> to vector<128xf32>
    %24 = vector.shape_cast %23 : vector<128xf32> to vector<128x1xf32>
    %c0_i32 = arith.constant 0 : i32
    %25 = arith.cmpi eq, %arg1, %c0_i32 : i32
    %26 = arith.extui %25 : i1 to i32
    %c0_i32_19 = arith.constant 0 : i32
    %27 = arith.cmpi ne, %26, %c0_i32_19 : i32
    scf.if %27 {
      %c0_24 = arith.constant 0 : index
      %c0_25 = arith.constant 0 : index
      %34 = vector.load %arg10[%c0_24, %c0_25] : memref<128x1xf32, #tpu.memory_space<vmem>>, vector<128x1xf32>
      tpu.vector_store %arg10[%c0_24, %c0_25], %24 {strides = array<i32>} : memref<128x1xf32, #tpu.memory_space<vmem>>, vector<128x1xf32>,
    } else {
    }
    %c0_i32_20 = arith.constant 0 : i32
    %28 = arith.cmpi sgt, %arg1, %c0_i32_20 : i32
    %29 = arith.extui %28 : i1 to i32
    %c0_i32_21 = arith.constant 0 : i32
    %30 = arith.cmpi ne, %29, %c0_i32_21 : i32
    scf.if %30 {
      %c0_24 = arith.constant 0 : index
      %c0_25 = arith.constant 0 : index
      %34 = vector.load %arg10[%c0_24, %c0_25] : memref<128x1xf32, #tpu.memory_space<vmem>>, vector<128x1xf32>
      %35 = arith.maximumf %34, %24 : vector<128x1xf32>
      %c0_26 = arith.constant 0 : index
      %c0_27 = arith.constant 0 : index
      %36 = vector.load %arg10[%c0_26, %c0_27] : memref<128x1xf32, #tpu.memory_space<vmem>>, vector<128x1xf32>
      tpu.vector_store %arg10[%c0_26, %c0_27], %35 {strides = array<i32>} : memref<128x1xf32, #tpu.memory_space<vmem>>, vector<128x1xf32>,
    } else {
    }
    %c0_i32_22 = arith.constant 0 : i32
    %31 = arith.cmpi eq, %arg1, %c0_i32_22 : i32
    %32 = arith.extui %31 : i1 to i32
    %c0_i32_23 = arith.constant 0 : i32
    %33 = arith.cmpi ne, %32, %c0_i32_23 : i32
    scf.if %33 {
      %c0_24 = arith.constant 0 : index
      %c0_25 = arith.constant 0 : index
      %34 = vector.load %arg10[%c0_24, %c0_25] : memref<128x1xf32, #tpu.memory_space<vmem>>, vector<128x1xf32>
      %c0_26 = arith.constant 0 : index
      %c0_27 = arith.constant 0 : index
      %c0_28 = arith.constant 0 : index
      %35 = vector.load %arg9[%c0_26, %c0_27, %c0_28] : memref<1x128x1xf32, #tpu.memory_space<vmem>>, vector<1x128x1xf32>
      %36 = vector.shape_cast %35 : vector<1x128x1xf32> to vector<128x1xf32>
      %37 = vector.shape_cast %34 : vector<128x1xf32> to vector<1x128x1xf32>
      tpu.vector_store %arg9[%c0_26, %c0_27, %c0_28], %37 {strides = array<i32>} : memref<1x128x1xf32, #tpu.memory_space<vmem>>, vector<1x128x1xf32>,
    } else {
    }
    return
  }
  func.func @transform_0(%arg0: i32, %arg1: i32) -> (i32, i32, i32) {
    %c0_i32 = arith.constant 0 : i32
    %c0_i32_0 = arith.constant 0 : i32
    return %arg0, %c0_i32, %arg1 : i32, i32, i32
  }
  func.func @transform_1(%arg0: i32, %arg1: i32) -> (i32, i32) {
    %c0_i32 = arith.constant 0 : i32
    %c0_i32_0 = arith.constant 0 : i32
    %c0_i32_1 = arith.constant 0 : i32
    return %c0_i32, %c0_i32_0 : i32, i32
  }
  func.func @transform_2(%arg0: i32, %arg1: i32) -> (i32, i32) {
    %c0_i32 = arith.constant 0 : i32
    %c0_i32_0 = arith.constant 0 : i32
    %c0_i32_1 = arith.constant 0 : i32
    return %c0_i32, %c0_i32_0 : i32, i32
  }
  func.func @transform_3(%arg0: i32, %arg1: i32) -> (i32, i32) {
    %c0_i32 = arith.constant 0 : i32
    %c0_i32_0 = arith.constant 0 : i32
    %c0_i32_1 = arith.constant 0 : i32
    return %c0_i32, %c0_i32_0 : i32, i32
  }
  func.func @transform_4(%arg0: i32, %arg1: i32) -> (i32, i32) {
    %c0_i32 = arith.constant 0 : i32
    %c0_i32_0 = arith.constant 0 : i32
    %c0_i32_1 = arith.constant 0 : i32
    return %c0_i32, %c0_i32_0 : i32, i32
  }
  func.func @transform_5(%arg0: i32, %arg1: i32) -> (i32, i32) {
    %c0_i32 = arith.constant 0 : i32
    %c0_i32_0 = arith.constant 0 : i32
    %c0_i32_1 = arith.constant 0 : i32
    return %c0_i32, %c0_i32_0 : i32, i32
  }
  func.func @transform_6(%arg0: i32, %arg1: i32) -> (i32, i32) {
    %c0_i32 = arith.constant 0 : i32
    %c0_i32_0 = arith.constant 0 : i32
    %c0_i32_1 = arith.constant 0 : i32
    return %c0_i32, %c0_i32_0 : i32, i32
  }
  func.func @transform_7(%arg0: i32, %arg1: i32) -> (i32, i32, i32) {
    %c0_i32 = arith.constant 0 : i32
    %c0_i32_0 = arith.constant 0 : i32
    %c0_i32_1 = arith.constant 0 : i32
    return %arg0, %c0_i32, %c0_i32_0 : i32, i32, i32
  }
}

</mosaic_0001>

<llo_original>
// kernel: tpu_custom_call.1
$region0: #{tpu_custom_call.1}
  #allocation0 [shape = 'u32[]', space=smem, size = 0x4, offset = 0x4, fixed_abs, tag = 'smem constant byte address 0x4 - core index']
  #allocation1 [shape = 'u32[144,128]{1,0:T(1,128)}', space=vmem, size = 0x12000, scoped, tag = 'internal scratch']
  #allocation2 [shape = 'f32[128,1]{1,0:T(8,128)}', space=vmem, size = 0x10000, scoped, tag = 'scratch operand']
  %s0 = inlined_call_operand.vmem [shape: bf16[2,8,200], index: 0, kind: input, shape index: {}]
  %s1 = inlined_call_operand.vmem [shape: bf16[32,8], index: 1, kind: input, shape index: {}]
  %s2 = inlined_call_operand.vmem [shape: f32[32,1], index: 2, kind: input, shape index: {}]
  %s3 = inlined_call_operand.vmem [shape: bf16[64,32], index: 3, kind: input, shape index: {}]
  %s4 = inlined_call_operand.vmem [shape: f32[64,1], index: 4, kind: input, shape index: {}]
  %s5 = inlined_call_operand.vmem [shape: bf16[128,64], index: 5, kind: input, shape index: {}]
  %s6 = inlined_call_operand.vmem [shape: f32[128,1], index: 6, kind: input, shape index: {}]
  %s7 = inlined_call_operand.vmem [shape: f32[2,128,1], index: 7, kind: output, shape index: {}]
  %s8 = sld [smem:[#allocation0]]
  $region73: #{tpu_custom_call.1} parent=0
    _
  %s10 = ssub.s32 1, %s8
  %s11 = scalar_select 0, %s10, %s8
  loop: start=0, step=1, limit=4
  $region2: #{tpu_custom_call.1} parent=0 // loop_pre_header
    _
  $region3: #{tpu_custom_call.1} parent=0 // loop_header
    %s13 = sphi 0, %s17
    %p14 = scmp.ge.s32.totalorder %s13, 4
    %s20 = sphi 0, %s32
    %s21 = sphi 0, %s28
    %s22 = sphi 0, %s20
    %s23 = sphi 0, %s21
    %s24 = sphi 0, %s22
    %s25 = sphi 0, %s23
    %s37 = sphi 0, %s39
    %s40 = sphi 0, %s37
    %s41 = sphi 0, %s40
    %s57 = sphi 0, %s41
    %s61 = sphi 0, %s61
    %s63 = sphi 0, %s61
    %s64 = sphi 0, %s63
    %s78 = sphi 0, %s64
    %s82 = sphi 0, %s82
    %s84 = sphi 0, %s82
    %s85 = sphi 0, %s84
    %s99 = sphi 0, %s85
    %s103 = sphi 0, %s103
    %s105 = sphi 0, %s103
    %s106 = sphi 0, %s105
    %s120 = sphi 0, %s106
    %s124 = sphi 0, %s124
    %s126 = sphi 0, %s124
    %s127 = sphi 0, %s126
    %s141 = sphi 0, %s127
    %s145 = sphi 0, %s145
    %s147 = sphi 0, %s145
    %s148 = sphi 0, %s147
    %s162 = sphi 0, %s148
    %s166 = sphi 0, %s166
    %s168 = sphi 0, %s166
    %s169 = sphi 0, %s168
    %s183 = sphi 0, %s169
    %s189 = sphi 0, %s191
    %s192 = sphi 0, %s189
    %s193 = sphi 0, %s192
    %s209 = sphi 0, %s193
  $region4: #{tpu_custom_call.1} parent=0 // loop_header_branch
    %16 = sbr.rel (%p14) target = $region8
  $region5: #{tpu_custom_call.1} parent=0 // loop_body
    %s18 = ssub.s32 %s13, 1
    %s19 = ssub.s32 %s13, 2
    %s26 = sadd.s32 1, %s21
    %p27 = scmp.ge.s32.totalorder %s26, 1
    %s28 = scalar_select %p27, 0, %s26
    %s29 = sadd.s32 1, %s20
    %s30 = scalar_select %p27, %s29, %s20
    %p31 = scmp.ge.s32.totalorder %s30, 2
    %s32 = scalar_select %p31, 0, %s30
    %s33 = ssub.s32 %s20, %s32
    %s34 = ssub.s32 %s21, %s28
    %s35 = sor.u32 %s33, %s34
    %p36 = scmp.eq.s32.totalorder %s35, 0
    %s38 = sadd.s32 %s37, 1
    %s39 = scalar_select %p36, %s37, %s38
    %p42 = pneg %p36
    %p43 = scmp.eq.s32.totalorder %s13, 1
    %p44 = por %p42, %p43
    %p45 = scmp.ne.s32.totalorder %s37, %s40
    %p46 = scmp.eq.s32.totalorder %s13, 0
    %p47 = por %p45, %p46
    %p48 = scmp.ne.s32.totalorder %s37, %s40
    %p49 = scmp.eq.s32.totalorder %s18, 1
    %p50 = por %p48, %p49
    %p51 = scmp.ne.s32.totalorder %s40, %s41
    %p52 = scmp.eq.s32.totalorder %s18, 0
    %p53 = por %p51, %p52
    %p54 = scmp.ne.s32.totalorder %s40, %s41
    %p55 = scmp.eq.s32.totalorder %s19, 1
    %p56 = por %p54, %p55
    %p58 = scmp.ne.s32.totalorder %s41, %s57
    %p59 = scmp.eq.s32.totalorder %s19, 0
    %p60 = por %p58, %p59
    %s62 = sadd.s32 %s61, 1
    %p65 = scmp.eq.s32.totalorder %s13, 1
    %p66 = scmp.ne.s32.totalorder %s61, %s63
    %p67 = scmp.eq.s32.totalorder %s13, 0
    %p68 = por %p66, %p67
    %p69 = scmp.ne.s32.totalorder %s61, %s63
    %p70 = scmp.eq.s32.totalorder %s18, 1
    %p71 = por %p69, %p70
    %p72 = scmp.ne.s32.totalorder %s63, %s64
    %p73 = scmp.eq.s32.totalorder %s18, 0
    %p74 = por %p72, %p73
    %p75 = scmp.ne.s32.totalorder %s63, %s64
    %p76 = scmp.eq.s32.totalorder %s19, 1
    %p77 = por %p75, %p76
    %p79 = scmp.ne.s32.totalorder %s64, %s78
    %p80 = scmp.eq.s32.totalorder %s19, 0
    %p81 = por %p79, %p80
    %s83 = sadd.s32 %s82, 1
    %p86 = scmp.eq.s32.totalorder %s13, 1
    %p87 = scmp.ne.s32.totalorder %s82, %s84
    %p88 = scmp.eq.s32.totalorder %s13, 0
    %p89 = por %p87, %p88
    %p90 = scmp.ne.s32.totalorder %s82, %s84
    %p91 = scmp.eq.s32.totalorder %s18, 1
    %p92 = por %p90, %p91
    %p93 = scmp.ne.s32.totalorder %s84, %s85
    %p94 = scmp.eq.s32.totalorder %s18, 0
    %p95 = por %p93, %p94
    %p96 = scmp.ne.s32.totalorder %s84, %s85
    %p97 = scmp.eq.s32.totalorder %s19, 1
    %p98 = por %p96, %p97
    %p100 = scmp.ne.s32.totalorder %s85, %s99
    %p101 = scmp.eq.s32.totalorder %s19, 0
    %p102 = por %p100, %p101
    %s104 = sadd.s32 %s103, 1
    %p107 = scmp.eq.s32.totalorder %s13, 1
    %p108 = scmp.ne.s32.totalorder %s103, %s105
    %p109 = scmp.eq.s32.totalorder %s13, 0
    %p110 = por %p108, %p109
    %p111 = scmp.ne.s32.totalorder %s103, %s105
    %p112 = scmp.eq.s32.totalorder %s18, 1
    %p113 = por %p111, %p112
    %p114 = scmp.ne.s32.totalorder %s105, %s106
    %p115 = scmp.eq.s32.totalorder %s18, 0
    %p116 = por %p114, %p115
    %p117 = scmp.ne.s32.totalorder %s105, %s106
    %p118 = scmp.eq.s32.totalorder %s19, 1
    %p119 = por %p117, %p118
    %p121 = scmp.ne.s32.totalorder %s106, %s120
    %p122 = scmp.eq.s32.totalorder %s19, 0
    %p123 = por %p121, %p122
    %s125 = sadd.s32 %s124, 1
    %p128 = scmp.eq.s32.totalorder %s13, 1
    %p129 = scmp.ne.s32.totalorder %s124, %s126
    %p130 = scmp.eq.s32.totalorder %s13, 0
    %p131 = por %p129, %p130
    %p132 = scmp.ne.s32.totalorder %s124, %s126
    %p133 = scmp.eq.s32.totalorder %s18, 1
    %p134 = por %p132, %p133
    %p135 = scmp.ne.s32.totalorder %s126, %s127
    %p136 = scmp.eq.s32.totalorder %s18, 0
    %p137 = por %p135, %p136
    %p138 = scmp.ne.s32.totalorder %s126, %s127
    %p139 = scmp.eq.s32.totalorder %s19, 1
    %p140 = por %p138, %p139
    %p142 = scmp.ne.s32.totalorder %s127, %s141
    %p143 = scmp.eq.s32.totalorder %s19, 0
    %p144 = por %p142, %p143
    %s146 = sadd.s32 %s145, 1
    %p149 = scmp.eq.s32.totalorder %s13, 1
    %p150 = scmp.ne.s32.totalorder %s145, %s147
    %p151 = scmp.eq.s32.totalorder %s13, 0
    %p152 = por %p150, %p151
    %p153 = scmp.ne.s32.totalorder %s145, %s147
    %p154 = scmp.eq.s32.totalorder %s18, 1
    %p155 = por %p153, %p154
    %p156 = scmp.ne.s32.totalorder %s147, %s148
    %p157 = scmp.eq.s32.totalorder %s18, 0
    %p158 = por %p156, %p157
    %p159 = scmp.ne.s32.totalorder %s147, %s148
    %p160 = scmp.eq.s32.totalorder %s19, 1
    %p161 = por %p159, %p160
    %p163 = scmp.ne.s32.totalorder %s148, %s162
    %p164 = scmp.eq.s32.totalorder %s19, 0
    %p165 = por %p163, %p164
    %s167 = sadd.s32 %s166, 1
    %p170 = scmp.eq.s32.totalorder %s13, 1
    %p171 = scmp.ne.s32.totalorder %s166, %s168
    %p172 = scmp.eq.s32.totalorder %s13, 0
    %p173 = por %p171, %p172
    %p174 = scmp.ne.s32.totalorder %s166, %s168
    %p175 = scmp.eq.s32.totalorder %s18, 1
    %p176 = por %p174, %p175
    %p177 = scmp.ne.s32.totalorder %s168, %s169
    %p178 = scmp.eq.s32.totalorder %s18, 0
    %p179 = por %p177, %p178
    %p180 = scmp.ne.s32.totalorder %s168, %s169
    %p181 = scmp.eq.s32.totalorder %s19, 1
    %p182 = por %p180, %p181
    %p184 = scmp.ne.s32.totalorder %s169, %s183
    %p185 = scmp.eq.s32.totalorder %s19, 0
    %p186 = por %p184, %p185
    %s187 = ssub.s32 %s20, %s32
    %p188 = scmp.eq.s32.totalorder %s187, 0
    %s190 = sadd.s32 %s189, 1
    %s191 = scalar_select %p188, %s189, %s190
    %p194 = pneg %p188
    %p195 = scmp.eq.s32.totalorder %s13, 1
    %p196 = por %p194, %p195
    %p197 = scmp.ne.s32.totalorder %s189, %s192
    %p198 = scmp.eq.s32.totalorder %s13, 0
    %p199 = por %p197, %p198
    %p200 = scmp.ne.s32.totalorder %s189, %s192
    %p201 = scmp.eq.s32.totalorder %s18, 1
    %p202 = por %p200, %p201
    %p203 = scmp.ne.s32.totalorder %s192, %s193
    %p204 = scmp.eq.s32.totalorder %s18, 0
    %p205 = por %p203, %p204
    %p206 = scmp.ne.s32.totalorder %s192, %s193
    %p207 = scmp.eq.s32.totalorder %s19, 1
    %p208 = por %p206, %p207
    %p210 = scmp.ne.s32.totalorder %s193, %s209
    %p211 = scmp.eq.s32.totalorder %s19, 0
    %p212 = por %p210, %p211
    %p213 = scmp.le.s32.totalorder 1, %s13
    %p214 = scmp.lt.s32.totalorder %s13, 3
    %p215 = pnand %p213, %p214
    %p216 = pneg %p215
    // Predicated region
    $region9: #{tpu_custom_call.1} parent=5 // pred_check
      _
    $region10: #{tpu_custom_call.1} parent=5 // pred_check_branch
      %218 = sbr.rel (%p215) target = $region12
    $region11: #{tpu_custom_call.1} parent=5 // pred_region
      %s219 = ssub.s32 %s13, 1
      // Predicated region
      $region13: #{tpu_custom_call.1} parent=11 // pred_check
        %p220 = pneg %p74
      $region14: #{tpu_custom_call.1} parent=11 // pred_check_branch
        %222 = sbr.rel (%p220) target = $region16
      $region15: #{tpu_custom_call.1} parent=11 // pred_region
        _
      $region16: #{tpu_custom_call.1} parent=11 // pred_fallthru
        _
      // Predicated region
      $region17: #{tpu_custom_call.1} parent=11 // pred_check
        %p223 = pneg %p95
      $region18: #{tpu_custom_call.1} parent=11 // pred_check_branch
        %225 = sbr.rel (%p223) target = $region20
      $region19: #{tpu_custom_call.1} parent=11 // pred_region
        _
      $region20: #{tpu_custom_call.1} parent=11 // pred_fallthru
        _
      // Predicated region
      $region21: #{tpu_custom_call.1} parent=11 // pred_check
        %p226 = pneg %p116
      $region22: #{tpu_custom_call.1} parent=11 // pred_check_branch
        %228 = sbr.rel (%p226) target = $region24
      $region23: #{tpu_custom_call.1} parent=11 // pred_region
        _
      $region24: #{tpu_custom_call.1} parent=11 // pred_fallthru
        _
      // Predicated region
      $region25: #{tpu_custom_call.1} parent=11 // pred_check
        %p229 = pneg %p137
      $region26: #{tpu_custom_call.1} parent=11 // pred_check_branch
        %231 = sbr.rel (%p229) target = $region28
      $region27: #{tpu_custom_call.1} parent=11 // pred_region
        _
      $region28: #{tpu_custom_call.1} parent=11 // pred_fallthru
        _
      // Predicated region
      $region29: #{tpu_custom_call.1} parent=11 // pred_check
        %p232 = pneg %p158
      $region30: #{tpu_custom_call.1} parent=11 // pred_check_branch
        %234 = sbr.rel (%p232) target = $region32
      $region31: #{tpu_custom_call.1} parent=11 // pred_region
        _
      $region32: #{tpu_custom_call.1} parent=11 // pred_fallthru
        _
      // Predicated region
      $region33: #{tpu_custom_call.1} parent=11 // pred_check
        %p235 = pneg %p179
      $region34: #{tpu_custom_call.1} parent=11 // pred_check_branch
        %237 = sbr.rel (%p235) target = $region36
      $region35: #{tpu_custom_call.1} parent=11 // pred_region
        _
      $region36: #{tpu_custom_call.1} parent=11 // pred_fallthru
        _
    $region12: #{tpu_custom_call.1} parent=5 // pred_fallthru
      _
    %p238 = scmp.lt.s32.totalorder %s13, 2
    // Predicated region
    $region37: #{tpu_custom_call.1} parent=5 // pred_check
      %p239 = pneg %p238
    $region38: #{tpu_custom_call.1} parent=5 // pred_check_branch
      %241 = sbr.rel (%p239) target = $region40
    $region39: #{tpu_custom_call.1} parent=5 // pred_region
      // Predicated region
      $region41: #{tpu_custom_call.1} parent=39 // pred_check
        %p242 = pneg %p47
      $region42: #{tpu_custom_call.1} parent=39 // pred_check_branch
        %244 = sbr.rel (%p242) target = $region44
      $region43: #{tpu_custom_call.1} parent=39 // pred_region
        %s245 = smul.u32 2, %s21
        %p246 = scmp.lt.s32.totalorder %s20, 1
        %s247 = scalar_select %p246, %s20, 1
        %p248 = scmp.lt.s32.totalorder %s245, 1
        %s249 = scalar_select %p248, %s245, 1
        %s250 = smul.addr %s247, 2
        %s251 = sadd.s32 %s249, %s250
        %s252 = smul.addr %s251, 4
        %s253 = scalar_lea.vmem %s0, %s252
        %s254 = smul.u32 2, %s21
      $region44: #{tpu_custom_call.1} parent=39 // pred_fallthru
        _
    $region40: #{tpu_custom_call.1} parent=5 // pred_fallthru
      _
    %p255 = scmp.le.s32.totalorder 1, %s13
    %p256 = scmp.lt.s32.totalorder %s13, 3
    %p257 = pnand %p255, %p256
    %p258 = pneg %p257
    // Predicated region
    $region45: #{tpu_custom_call.1} parent=5 // pred_check
      _
    $region46: #{tpu_custom_call.1} parent=5 // pred_check_branch
      %260 = sbr.rel (%p257) target = $region48
    $region47: #{tpu_custom_call.1} parent=5 // pred_region
      %s261 = ssub.s32 %s13, 1
      %s262 = smul.u32 2, %s23
      %p263 = scmp.lt.s32.totalorder %s22, 1
      %s264 = scalar_select %p263, %s22, 1
      %p265 = scmp.lt.s32.totalorder %s262, 1
      %s266 = scalar_select %p265, %s262, 1
      %s267 = smul.addr %s264, 2
      %s268 = sadd.s32 %s266, %s267
      %s269 = smul.addr %s268, 4
      %s270 = scalar_lea.vmem %s0, %s269
      %p271 = pneg %p53
      %p272 = pneg %p50
      %p273 = pneg %p74
      %p274 = pneg %p71
      %p275 = pneg %p95
      %p276 = pneg %p92
      %p277 = pneg %p116
      %p278 = pneg %p113
      %p279 = pneg %p137
      %p280 = pneg %p134
      %p281 = pneg %p158
      %p282 = pneg %p155
      %p283 = pneg %p179
      %p284 = pneg %p176
      %p285 = pneg %p205
      %p286 = pneg %p202
      %p287 = scmp.lt.s32.totalorder %s22, 1
      %s288 = scalar_select %p287, %s22, 1
      %s289 = smul.addr %s288, 16
      %s290 = smul.addr %s289, 8
      %s291 = scalar_lea.vmem %s7, %s290
      %s292 = smul.u32 2, %s23
      %p293 = scmp.lt.s32.totalorder %s22, 1
      %s294 = scalar_select %p293, %s22, 1
      %p295 = scmp.lt.s32.totalorder %s292, 1
      %s296 = scalar_select %p295, %s292, 1
      %s297 = smul.addr %s294, 2
      %s298 = sadd.s32 %s296, %s297
      %s299 = smul.addr %s298, 4
      %s300 = scalar_lea.vmem %s0, %s299
      %s301 = smul.u32 2, %s23
      %p302 = scmp.lt.s32.totalorder %s22, 1
      %s303 = scalar_select %p302, %s22, 1
      %s304 = smul.addr %s303, 16
      %s305 = smul.addr %s304, 8
      %s306 = scalar_lea.vmem %s7, %s305
      %v308 = vld [vmem:[%s300] sm:$0xff]
      %v309 = vld [vmem:[%s1] sm:$0xf]
      %v310 = vld [vmem:[%s1 + $0x4] sm:$0xf]
      %v311 = vld [vmem:[%s1 + $0x8] sm:$0xf]
      %v312 = vld [vmem:[%s1 + $0xc] sm:$0xf]
      %v313 = vld [vmem:[%s2] sm:$0xff]
      %v314 = vld [vmem:[%s2 + $0x8] sm:$0xff]
      %v315 = vld [vmem:[%s2 + $0x10] sm:$0xff]
      %v316 = vld [vmem:[%s2 + $0x18] sm:$0xff]
      %318 = vset.pattern.permute.xlu0 0
      %319 = vperm.xlu0 %318, %v313
      %v320 = vpop.permute.xlu0 %319
      %323 = vset.pattern.permute.xlu0 0
      %324 = vperm.xlu0 %323, %v314
      %v325 = vpop.permute.xlu0 %324
      %328 = vset.pattern.permute.xlu0 0
      %329 = vperm.xlu0 %328, %v315
      %v330 = vpop.permute.xlu0 %329
      %333 = vset.pattern.permute.xlu0 0
      %334 = vperm.xlu0 %333, %v316
      %v335 = vpop.permute.xlu0 %334
      %v341 = vunpack.c.l.b16 %v309
      %v342 = vunpack.c.l.b16 %v310
      %v343 = vunpack.c.l.b16 %v311
      %v344 = vunpack.c.l.b16 %v312
      %v345 = vpack.c.b16 %v342, %v341
      %v346 = vpack.c.b16 %v344, %v343
      %v348 = vunpack.c.l.b16 %v308
      %v349 = vunpack.c.h.b16 %v308
      %v350 = vpack.c.b16 %v348, %v348
      %v351 = vpack.c.b16 %v349, %v349
      %vm352 = vcmask 64512
      %v354 = vsel %vm352, %v345, 0
      %v357 = vsel %vm352, %v346, 0
      %vm359 = vcmask 1043456
      %v361 = vsel %vm359, %v350, 0
      %v364 = vsel %vm359, %v351, 0
      %366 = vmatprep.subr.bf16.mxu0 %v364
      %367 = vmatpush1.bf16.msra.mxu0 %v361
      %368 = vmatprep.subr.bf16.mxu0 0
      %369 = vmatpush1.bf16.msra.mxu0 0
      %370 = vmatprep.subr.bf16.mxu0 0
      %371 = vmatpush1.bf16.msra.mxu0 0
      %372 = vmatprep.subr.bf16.mxu0 0
      %373 = vmatpush1.bf16.msra.mxu0 0
      %374 = vmatprep.subr.bf16.mxu0 0
      %375 = vmatpush1.bf16.msra.mxu0 0
      %376 = vmatprep.subr.bf16.mxu0 0
      %377 = vmatpush1.bf16.msra.mxu0 0
      %378 = vmatprep.subr.bf16.mxu0 0
      %379 = vmatpush1.bf16.msra.mxu0 0
      %380 = vmatprep.subr.bf16.mxu0 0
      %381 = vmatpush1.bf16.msra.mxu0 0
      %382 = vmatprep.subr.bf16.mxu0 0
      %383 = vmatpush1.bf16.msra.mxu0 0
      %384 = vmatprep.subr.bf16.mxu0 0
      %385 = vmatpush1.bf16.msra.mxu0 0
      %386 = vmatprep.subr.bf16.mxu0 0
      %387 = vmatpush1.bf16.msra.mxu0 0
      %388 = vmatprep.subr.bf16.mxu0 0
      %389 = vmatpush1.bf16.msra.mxu0 0
      %390 = vmatprep.subr.bf16.mxu0 0
      %391 = vmatpush1.bf16.msra.mxu0 0
      %392 = vmatprep.subr.bf16.mxu0 0
      %393 = vmatpush1.bf16.msra.mxu0 0
      %394 = vmatprep.subr.bf16.mxu0 0
      %395 = vmatpush1.bf16.msra.mxu0 0
      %396 = vmatprep.subr.bf16.mxu0 0
      %397 = vmatpush1.bf16.msra.mxu0 0
      %398 = vmatprep.mubr.bf16.mxu0 0
      %399 = vmatmul.mubr.bf16.gmra.mrb[0].mxu0 %v354
      %v400 = vpop.f32.mrb[0].mxu0
      %v401 = vadd.f32 %v320, %v400
      %v402 = vpop.f32.mrb[0].mxu0
      %v403 = vadd.f32 %v320, %v402
      %v404 = vpop.f32.mrb[0].mxu0
      %v405 = vadd.f32 %v325, %v404
      %v406 = vpop.f32.mrb[0].mxu0
      %v407 = vadd.f32 %v325, %v406
      %408 = vmatprep.mubr.bf16.mxu0 0
      %409 = vmatmul.mubr.bf16.gmra.mrb[0].mxu0 %v357
      %v410 = vpop.f32.mrb[0].mxu0
      %v411 = vadd.f32 %v330, %v410
      %v412 = vpop.f32.mrb[0].mxu0
      %v413 = vadd.f32 %v330, %v412
      %v414 = vpop.f32.mrb[0].mxu0
      %v415 = vadd.f32 %v335, %v414
      %v416 = vpop.f32.mrb[0].mxu0
      %v417 = vadd.f32 %v335, %v416
      %418 = vdwg.mxu0
      %v419 = vmax.f32 %v401, 0.0
      %v420 = vmax.f32 %v403, 0.0
      %v421 = vmax.f32 %v405, 0.0
      %v422 = vmax.f32 %v407, 0.0
      %v423 = vmax.f32 %v411, 0.0
      %v424 = vmax.f32 %v413, 0.0
      %v425 = vmax.f32 %v415, 0.0
      %v426 = vmax.f32 %v417, 0.0
      %v427 = vld [vmem:[%s3] sm:$0xf]
      %v428 = vld [vmem:[%s3 + $0x4] sm:$0xf]
      %v429 = vld [vmem:[%s3 + $0x8] sm:$0xf]
      %v430 = vld [vmem:[%s3 + $0xc] sm:$0xf]
      %v431 = vld [vmem:[%s3 + $0x10] sm:$0xf]
      %v432 = vld [vmem:[%s3 + $0x14] sm:$0xf]
      %v433 = vld [vmem:[%s3 + $0x18] sm:$0xf]
      %v434 = vld [vmem:[%s3 + $0x1c] sm:$0xf]
      %v435 = vld [vmem:[%s4] sm:$0xff]
      %v436 = vld [vmem:[%s4 + $0x8] sm:$0xff]
      %v437 = vld [vmem:[%s4 + $0x10] sm:$0xff]
      %v438 = vld [vmem:[%s4 + $0x18] sm:$0xff]
      %v439 = vld [vmem:[%s4 + $0x20] sm:$0xff]
      %v440 = vld [vmem:[%s4 + $0x28] sm:$0xff]
      %v441 = vld [vmem:[%s4 + $0x30] sm:$0xff]
      %v442 = vld [vmem:[%s4 + $0x38] sm:$0xff]
      %v443 = vpack.c.bf16 %v421, %v419
      %v444 = vpack.c.bf16 %v422, %v420
      %v445 = vpack.c.bf16 %v425, %v423
      %v446 = vpack.c.bf16 %v426, %v424
      %448 = vset.pattern.permute.xlu0 0
      %449 = vperm.xlu0 %448, %v435
      %v450 = vpop.permute.xlu0 %449
      %453 = vset.pattern.permute.xlu0 0
      %454 = vperm.xlu0 %453, %v436
      %v455 = vpop.permute.xlu0 %454
      %458 = vset.pattern.permute.xlu0 0
      %459 = vperm.xlu0 %458, %v437
      %v460 = vpop.permute.xlu0 %459
      %463 = vset.pattern.permute.xlu0 0
      %464 = vperm.xlu0 %463, %v438
      %v465 = vpop.permute.xlu0 %464
      %468 = vset.pattern.permute.xlu0 0
      %469 = vperm.xlu0 %468, %v439
      %v470 = vpop.permute.xlu0 %469
      %473 = vset.pattern.permute.xlu0 0
      %474 = vperm.xlu0 %473, %v440
      %v475 = vpop.permute.xlu0 %474
      %478 = vset.pattern.permute.xlu0 0
      %479 = vperm.xlu0 %478, %v441
      %v480 = vpop.permute.xlu0 %479
      %483 = vset.pattern.permute.xlu0 0
      %484 = vperm.xlu0 %483, %v442
      %v485 = vpop.permute.xlu0 %484
      %v495 = vunpack.c.l.b16 %v427
      %v496 = vunpack.c.l.b16 %v428
      %v497 = vunpack.c.l.b16 %v429
      %v498 = vunpack.c.l.b16 %v430
      %v499 = vunpack.c.l.b16 %v431
      %v500 = vunpack.c.l.b16 %v432
      %v501 = vunpack.c.l.b16 %v433
      %v502 = vunpack.c.l.b16 %v434
      %v503 = vpack.c.b16 %v496, %v495
      %v504 = vpack.c.b16 %v498, %v497
      %v505 = vpack.c.b16 %v500, %v499
      %v506 = vpack.c.b16 %v502, %v501
      %vm507 = vcmask 261120
      %v509 = vsel %vm507, %v503, 0
      %v512 = vsel %vm507, %v504, 0
      %v515 = vsel %vm507, %v505, 0
      %v518 = vsel %vm507, %v506, 0
      %520 = vmatprep.subr.bf16.mxu0 %v444
      %521 = vmatpush1.bf16.msra.mxu0 %v443
      %522 = vmatprep.subr.bf16.mxu0 %v446
      %523 = vmatpush1.bf16.msra.mxu0 %v445
      %524 = vmatprep.subr.bf16.mxu0 0
      %525 = vmatpush1.bf16.msra.mxu0 0
      %526 = vmatprep.subr.bf16.mxu0 0
      %527 = vmatpush1.bf16.msra.mxu0 0
      %528 = vmatprep.subr.bf16.mxu0 0
      %529 = vmatpush1.bf16.msra.mxu0 0
      %530 = vmatprep.subr.bf16.mxu0 0
      %531 = vmatpush1.bf16.msra.mxu0 0
      %532 = vmatprep.subr.bf16.mxu0 0
      %533 = vmatpush1.bf16.msra.mxu0 0
      %534 = vmatprep.subr.bf16.mxu0 0
      %535 = vmatpush1.bf16.msra.mxu0 0
      %536 = vmatprep.subr.bf16.mxu0 0
      %537 = vmatpush1.bf16.msra.mxu0 0
      %538 = vmatprep.subr.bf16.mxu0 0
      %539 = vmatpush1.bf16.msra.mxu0 0
      %540 = vmatprep.subr.bf16.mxu0 0
      %541 = vmatpush1.bf16.msra.mxu0 0
      %542 = vmatprep.subr.bf16.mxu0 0
      %543 = vmatpush1.bf16.msra.mxu0 0
      %544 = vmatprep.subr.bf16.mxu0 0
      %545 = vmatpush1.bf16.msra.mxu0 0
      %546 = vmatprep.subr.bf16.mxu0 0
      %547 = vmatpush1.bf16.msra.mxu0 0
      %548 = vmatprep.subr.bf16.mxu0 0
      %549 = vmatpush1.bf16.msra.mxu0 0
      %550 = vmatprep.subr.bf16.mxu0 0
      %551 = vmatpush1.bf16.msra.mxu0 0
      %552 = vmatprep.mubr.bf16.mxu0 0
      %553 = vmatmul.mubr.bf16.gmra.mrb[0].mxu0 %v509
      %v554 = vpop.f32.mrb[0].mxu0
      %v555 = vadd.f32 %v450, %v554
      %v556 = vpop.f32.mrb[0].mxu0
      %v557 = vadd.f32 %v450, %v556
      %v558 = vpop.f32.mrb[0].mxu0
      %v559 = vadd.f32 %v455, %v558
      %v560 = vpop.f32.mrb[0].mxu0
      %v561 = vadd.f32 %v455, %v560
      %562 = vmatprep.mubr.bf16.mxu0 0
      %563 = vmatmul.mubr.bf16.gmra.mrb[0].mxu0 %v512
      %v564 = vpop.f32.mrb[0].mxu0
      %v565 = vadd.f32 %v460, %v564
      %v566 = vpop.f32.mrb[0].mxu0
      %v567 = vadd.f32 %v460, %v566
      %v568 = vpop.f32.mrb[0].mxu0
      %v569 = vadd.f32 %v465, %v568
      %v570 = vpop.f32.mrb[0].mxu0
      %v571 = vadd.f32 %v465, %v570
      %572 = vmatprep.mubr.bf16.mxu0 0
      %573 = vmatmul.mubr.bf16.gmra.mrb[0].mxu0 %v515
      %v574 = vpop.f32.mrb[0].mxu0
      %v575 = vadd.f32 %v470, %v574
      %v576 = vpop.f32.mrb[0].mxu0
      %v577 = vadd.f32 %v470, %v576
      %v578 = vpop.f32.mrb[0].mxu0
      %v579 = vadd.f32 %v475, %v578
      %v580 = vpop.f32.mrb[0].mxu0
      %v581 = vadd.f32 %v475, %v580
      %582 = vmatprep.mubr.bf16.mxu0 0
      %583 = vmatmul.mubr.bf16.gmra.mrb[0].mxu0 %v518
      %v584 = vpop.f32.mrb[0].mxu0
      %v585 = vadd.f32 %v480, %v584
      %v586 = vpop.f32.mrb[0].mxu0
      %v587 = vadd.f32 %v480, %v586
      %v588 = vpop.f32.mrb[0].mxu0
      %v589 = vadd.f32 %v485, %v588
      %v590 = vpop.f32.mrb[0].mxu0
      %v591 = vadd.f32 %v485, %v590
      %592 = vdwg.mxu0
      %v593 = vmax.f32 %v555, 0.0
      %v594 = vmax.f32 %v557, 0.0
      %v595 = vmax.f32 %v559, 0.0
      %v596 = vmax.f32 %v561, 0.0
      %v597 = vmax.f32 %v565, 0.0
      %v598 = vmax.f32 %v567, 0.0
      %v599 = vmax.f32 %v569, 0.0
      %v600 = vmax.f32 %v571, 0.0
      %v601 = vmax.f32 %v575, 0.0
      %v602 = vmax.f32 %v577, 0.0
      %v603 = vmax.f32 %v579, 0.0
      %v604 = vmax.f32 %v581, 0.0
      %v605 = vmax.f32 %v585, 0.0
      %v606 = vmax.f32 %v587, 0.0
      %v607 = vmax.f32 %v589, 0.0
      %v608 = vmax.f32 %v591, 0.0
      %v609 = vld [vmem:[%s5] sm:$0xf]
      %v610 = vld [vmem:[%s5 + $0x4] sm:$0xf]
      %v611 = vld [vmem:[%s5 + $0x8] sm:$0xf]
      %v612 = vld [vmem:[%s5 + $0xc] sm:$0xf]
      %v613 = vld [vmem:[%s5 + $0x10] sm:$0xf]
      %v614 = vld [vmem:[%s5 + $0x14] sm:$0xf]
      %v615 = vld [vmem:[%s5 + $0x18] sm:$0xf]
      %v616 = vld [vmem:[%s5 + $0x1c] sm:$0xf]
      %v617 = vld [vmem:[%s5 + $0x20] sm:$0xf]
      %v618 = vld [vmem:[%s5 + $0x24] sm:$0xf]
      %v619 = vld [vmem:[%s5 + $0x28] sm:$0xf]
      %v620 = vld [vmem:[%s5 + $0x2c] sm:$0xf]
      %v621 = vld [vmem:[%s5 + $0x30] sm:$0xf]
      %v622 = vld [vmem:[%s5 + $0x34] sm:$0xf]
      %v623 = vld [vmem:[%s5 + $0x38] sm:$0xf]
      %v624 = vld [vmem:[%s5 + $0x3c] sm:$0xf]
      %v625 = vld [vmem:[%s6] sm:$0xff]
      %v626 = vld [vmem:[%s6 + $0x8] sm:$0xff]
      %v627 = vld [vmem:[%s6 + $0x10] sm:$0xff]
      %v628 = vld [vmem:[%s6 + $0x18] sm:$0xff]
      %v629 = vld [vmem:[%s6 + $0x20] sm:$0xff]
      %v630 = vld [vmem:[%s6 + $0x28] sm:$0xff]
      %v631 = vld [vmem:[%s6 + $0x30] sm:$0xff]
      %v632 = vld [vmem:[%s6 + $0x38] sm:$0xff]
      %v633 = vld [vmem:[%s6 + $0x40] sm:$0xff]
      %v634 = vld [vmem:[%s6 + $0x48] sm:$0xff]
      %v635 = vld [vmem:[%s6 + $0x50] sm:$0xff]
      %v636 = vld [vmem:[%s6 + $0x58] sm:$0xff]
      %v637 = vld [vmem:[%s6 + $0x60] sm:$0xff]
      %v638 = vld [vmem:[%s6 + $0x68] sm:$0xff]
      %v639 = vld [vmem:[%s6 + $0x70] sm:$0xff]
      %v640 = vld [vmem:[%s6 + $0x78] sm:$0xff]
      %v641 = vpack.c.bf16 %v595, %v593
      %v642 = vpack.c.bf16 %v596, %v594
      %v643 = vpack.c.bf16 %v599, %v597
      %v644 = vpack.c.bf16 %v600, %v598
      %v645 = vpack.c.bf16 %v603, %v601
      %v646 = vpack.c.bf16 %v604, %v602
      %v647 = vpack.c.bf16 %v607, %v605
      %v648 = vpack.c.bf16 %v608, %v606
      %650 = vset.pattern.permute.xlu0 0
      %651 = vperm.xlu0 %650, %v625
      %v652 = vpop.permute.xlu0 %651
      %655 = vset.pattern.permute.xlu0 0
      %656 = vperm.xlu0 %655, %v626
      %v657 = vpop.permute.xlu0 %656
      %660 = vset.pattern.permute.xlu0 0
      %661 = vperm.xlu0 %660, %v627
      %v662 = vpop.permute.xlu0 %661
      %665 = vset.pattern.permute.xlu0 0
      %666 = vperm.xlu0 %665, %v628
      %v667 = vpop.permute.xlu0 %666
      %670 = vset.pattern.permute.xlu0 0
      %671 = vperm.xlu0 %670, %v629
      %v672 = vpop.permute.xlu0 %671
      %675 = vset.pattern.permute.xlu0 0
      %676 = vperm.xlu0 %675, %v630
      %v677 = vpop.permute.xlu0 %676
      %680 = vset.pattern.permute.xlu0 0
      %681 = vperm.xlu0 %680, %v631
      %v682 = vpop.permute.xlu0 %681
      %685 = vset.pattern.permute.xlu0 0
      %686 = vperm.xlu0 %685, %v632
      %v687 = vpop.permute.xlu0 %686
      %690 = vset.pattern.permute.xlu0 0
      %691 = vperm.xlu0 %690, %v633
      %v692 = vpop.permute.xlu0 %691
      %695 = vset.pattern.permute.xlu0 0
      %696 = vperm.xlu0 %695, %v634
      %v697 = vpop.permute.xlu0 %696
      %700 = vset.pattern.permute.xlu0 0
      %701 = vperm.xlu0 %700, %v635
      %v702 = vpop.permute.xlu0 %701
      %705 = vset.pattern.permute.xlu0 0
      %706 = vperm.xlu0 %705, %v636
      %v707 = vpop.permute.xlu0 %706
      %710 = vset.pattern.permute.xlu0 0
      %711 = vperm.xlu0 %710, %v637
      %v712 = vpop.permute.xlu0 %711
      %715 = vset.pattern.permute.xlu0 0
      %716 = vperm.xlu0 %715, %v638
      %v717 = vpop.permute.xlu0 %716
      %720 = vset.pattern.permute.xlu0 0
      %721 = vperm.xlu0 %720, %v639
      %v722 = vpop.permute.xlu0 %721
      %725 = vset.pattern.permute.xlu0 0
      %726 = vperm.xlu0 %725, %v640
      %v727 = vpop.permute.xlu0 %726
      %v745 = vunpack.c.l.b16 %v609
      %v746 = vunpack.c.l.b16 %v610
      %v747 = vunpack.c.l.b16 %v611
      %v748 = vunpack.c.l.b16 %v612
      %v749 = vunpack.c.l.b16 %v613
      %v750 = vunpack.c.l.b16 %v614
      %v751 = vunpack.c.l.b16 %v615
      %v752 = vunpack.c.l.b16 %v616
      %v753 = vunpack.c.l.b16 %v617
      %v754 = vunpack.c.l.b16 %v618
      %v755 = vunpack.c.l.b16 %v619
      %v756 = vunpack.c.l.b16 %v620
      %v757 = vunpack.c.l.b16 %v621
      %v758 = vunpack.c.l.b16 %v622
      %v759 = vunpack.c.l.b16 %v623
      %v760 = vunpack.c.l.b16 %v624
      %v761 = vpack.c.b16 %v746, %v745
      %v762 = vpack.c.b16 %v748, %v747
      %v763 = vpack.c.b16 %v750, %v749
      %v764 = vpack.c.b16 %v752, %v751
      %v765 = vpack.c.b16 %v754, %v753
      %v766 = vpack.c.b16 %v756, %v755
      %v767 = vpack.c.b16 %v758, %v757
      %v768 = vpack.c.b16 %v760, %v759
      %vm769 = vcmask 523264
      %v771 = vsel %vm769, %v761, 0
      %v774 = vsel %vm769, %v762, 0
      %v777 = vsel %vm769, %v763, 0
      %v780 = vsel %vm769, %v764, 0
      %v783 = vsel %vm769, %v765, 0
      %v786 = vsel %vm769, %v766, 0
      %v789 = vsel %vm769, %v767, 0
      %v792 = vsel %vm769, %v768, 0
      %794 = vmatprep.subr.bf16.mxu0 %v642
      %795 = vmatpush1.bf16.msra.mxu0 %v641
      %796 = vmatprep.subr.bf16.mxu0 %v644
      %797 = vmatpush1.bf16.msra.mxu0 %v643
      %798 = vmatprep.subr.bf16.mxu0 %v646
      %799 = vmatpush1.bf16.msra.mxu0 %v645
      %800 = vmatprep.subr.bf16.mxu0 %v648
      %801 = vmatpush1.bf16.msra.mxu0 %v647
      %802 = vmatprep.subr.bf16.mxu0 0
      %803 = vmatpush1.bf16.msra.mxu0 0
      %804 = vmatprep.subr.bf16.mxu0 0
      %805 = vmatpush1.bf16.msra.mxu0 0
      %806 = vmatprep.subr.bf16.mxu0 0
      %807 = vmatpush1.bf16.msra.mxu0 0
      %808 = vmatprep.subr.bf16.mxu0 0
      %809 = vmatpush1.bf16.msra.mxu0 0
      %810 = vmatprep.subr.bf16.mxu0 0
      %811 = vmatpush1.bf16.msra.mxu0 0
      %812 = vmatprep.subr.bf16.mxu0 0
      %813 = vmatpush1.bf16.msra.mxu0 0
      %814 = vmatprep.subr.bf16.mxu0 0
      %815 = vmatpush1.bf16.msra.mxu0 0
      %816 = vmatprep.subr.bf16.mxu0 0
      %817 = vmatpush1.bf16.msra.mxu0 0
      %818 = vmatprep.subr.bf16.mxu0 0
      %819 = vmatpush1.bf16.msra.mxu0 0
      %820 = vmatprep.subr.bf16.mxu0 0
      %821 = vmatpush1.bf16.msra.mxu0 0
      %822 = vmatprep.subr.bf16.mxu0 0
      %823 = vmatpush1.bf16.msra.mxu0 0
      %824 = vmatprep.subr.bf16.mxu0 0
      %825 = vmatpush1.bf16.msra.mxu0 0
      %826 = vmatprep.mubr.bf16.mxu0 0
      %827 = vmatmul.mubr.bf16.gmra.mrb[0].mxu0 %v771
      %v828 = vpop.f32.mrb[0].mxu0
      %v829 = vadd.f32 %v652, %v828
      %v830 = vpop.f32.mrb[0].mxu0
      %v831 = vadd.f32 %v652, %v830
      %v832 = vpop.f32.mrb[0].mxu0
      %v833 = vadd.f32 %v657, %v832
      %v834 = vpop.f32.mrb[0].mxu0
      %v835 = vadd.f32 %v657, %v834
      %836 = vmatprep.mubr.bf16.mxu0 0
      %837 = vmatmul.mubr.bf16.gmra.mrb[0].mxu0 %v774
      %v838 = vpop.f32.mrb[0].mxu0
      %v839 = vadd.f32 %v662, %v838
      %v840 = vpop.f32.mrb[0].mxu0
      %v841 = vadd.f32 %v662, %v840
      %v842 = vpop.f32.mrb[0].mxu0
      %v843 = vadd.f32 %v667, %v842
      %v844 = vpop.f32.mrb[0].mxu0
      %v845 = vadd.f32 %v667, %v844
      %846 = vmatprep.mubr.bf16.mxu0 0
      %847 = vmatmul.mubr.bf16.gmra.mrb[0].mxu0 %v777
      %v848 = vpop.f32.mrb[0].mxu0
      %v849 = vadd.f32 %v672, %v848
      %v850 = vpop.f32.mrb[0].mxu0
      %v851 = vadd.f32 %v672, %v850
      %v852 = vpop.f32.mrb[0].mxu0
      %v853 = vadd.f32 %v677, %v852
      %v854 = vpop.f32.mrb[0].mxu0
      %v855 = vadd.f32 %v677, %v854
      %856 = vmatprep.mubr.bf16.mxu0 0
      %857 = vmatmul.mubr.bf16.gmra.mrb[0].mxu0 %v780
      %v858 = vpop.f32.mrb[0].mxu0
      %v859 = vadd.f32 %v682, %v858
      %v860 = vpop.f32.mrb[0].mxu0
      %v861 = vadd.f32 %v682, %v860
      %v862 = vpop.f32.mrb[0].mxu0
      %v863 = vadd.f32 %v687, %v862
      %v864 = vpop.f32.mrb[0].mxu0
      %v865 = vadd.f32 %v687, %v864
      %866 = vmatprep.mubr.bf16.mxu0 0
      %867 = vmatmul.mubr.bf16.gmra.mrb[0].mxu0 %v783
      %v868 = vpop.f32.mrb[0].mxu0
      %v869 = vadd.f32 %v692, %v868
      %v870 = vpop.f32.mrb[0].mxu0
      %v871 = vadd.f32 %v692, %v870
      %v872 = vpop.f32.mrb[0].mxu0
      %v873 = vadd.f32 %v697, %v872
      %v874 = vpop.f32.mrb[0].mxu0
      %v875 = vadd.f32 %v697, %v874
      %876 = vmatprep.mubr.bf16.mxu0 0
      %877 = vmatmul.mubr.bf16.gmra.mrb[0].mxu0 %v786
      %v878 = vpop.f32.mrb[0].mxu0
      %v879 = vadd.f32 %v702, %v878
      %v880 = vpop.f32.mrb[0].mxu0
      %v881 = vadd.f32 %v702, %v880
      %v882 = vpop.f32.mrb[0].mxu0
      %v883 = vadd.f32 %v707, %v882
      %v884 = vpop.f32.mrb[0].mxu0
      %v885 = vadd.f32 %v707, %v884
      %886 = vmatprep.mubr.bf16.mxu0 0
      %887 = vmatmul.mubr.bf16.gmra.mrb[0].mxu0 %v789
      %v888 = vpop.f32.mrb[0].mxu0
      %v889 = vadd.f32 %v712, %v888
      %v890 = vpop.f32.mrb[0].mxu0
      %v891 = vadd.f32 %v712, %v890
      %v892 = vpop.f32.mrb[0].mxu0
      %v893 = vadd.f32 %v717, %v892
      %v894 = vpop.f32.mrb[0].mxu0
      %v895 = vadd.f32 %v717, %v894
      %896 = vmatprep.mubr.bf16.mxu0 0
      %897 = vmatmul.mubr.bf16.gmra.mrb[0].mxu0 %v792
      %v898 = vpop.f32.mrb[0].mxu0
      %v899 = vadd.f32 %v722, %v898
      %v900 = vpop.f32.mrb[0].mxu0
      %v901 = vadd.f32 %v722, %v900
      %v902 = vpop.f32.mrb[0].mxu0
      %v903 = vadd.f32 %v727, %v902
      %v904 = vpop.f32.mrb[0].mxu0
      %v905 = vadd.f32 %v727, %v904
      %906 = vdwg.mxu0
      %vm907 = vcmask 588800
      %v908 = vsel %vm907, %v831, -inf
      %v909 = vmax.f32 %v829, %v908
      %910 = vmax.xlane.f32.xlu0 %v909
      %v911 = vpop.xlane.xlu0 %910
      %v912 = vsel %vm907, %v835, -inf
      %v913 = vmax.f32 %v833, %v912
      %914 = vmax.xlane.f32.xlu0 %v913
      %v915 = vpop.xlane.xlu0 %914
      %v916 = vsel %vm907, %v841, -inf
      %v917 = vmax.f32 %v839, %v916
      %918 = vmax.xlane.f32.xlu0 %v917
      %v919 = vpop.xlane.xlu0 %918
      %v920 = vsel %vm907, %v845, -inf
      %v921 = vmax.f32 %v843, %v920
      %922 = vmax.xlane.f32.xlu0 %v921
      %v923 = vpop.xlane.xlu0 %922
      %v924 = vsel %vm907, %v851, -inf
      %v925 = vmax.f32 %v849, %v924
      %926 = vmax.xlane.f32.xlu0 %v925
      %v927 = vpop.xlane.xlu0 %926
      %v928 = vsel %vm907, %v855, -inf
      %v929 = vmax.f32 %v853, %v928
      %930 = vmax.xlane.f32.xlu0 %v929
      %v931 = vpop.xlane.xlu0 %930
      %v932 = vsel %vm907, %v861, -inf
      %v933 = vmax.f32 %v859, %v932
      %934 = vmax.xlane.f32.xlu0 %v933
      %v935 = vpop.xlane.xlu0 %934
      %v936 = vsel %vm907, %v865, -inf
      %v937 = vmax.f32 %v863, %v936
      %938 = vmax.xlane.f32.xlu0 %v937
      %v939 = vpop.xlane.xlu0 %938
      %v940 = vsel %vm907, %v871, -inf
      %v941 = vmax.f32 %v869, %v940
      %942 = vmax.xlane.f32.xlu0 %v941
      %v943 = vpop.xlane.xlu0 %942
      %v944 = vsel %vm907, %v875, -inf
      %v945 = vmax.f32 %v873, %v944
      %946 = vmax.xlane.f32.xlu0 %v945
      %v947 = vpop.xlane.xlu0 %946
      %v948 = vsel %vm907, %v881, -inf
      %v949 = vmax.f32 %v879, %v948
      %950 = vmax.xlane.f32.xlu0 %v949
      %v951 = vpop.xlane.xlu0 %950
      %v952 = vsel %vm907, %v885, -inf
      %v953 = vmax.f32 %v883, %v952
      %954 = vmax.xlane.f32.xlu0 %v953
      %v955 = vpop.xlane.xlu0 %954
      %v956 = vsel %vm907, %v891, -inf
      %v957 = vmax.f32 %v889, %v956
      %958 = vmax.xlane.f32.xlu0 %v957
      %v959 = vpop.xlane.xlu0 %958
      %v960 = vsel %vm907, %v895, -inf
      %v961 = vmax.f32 %v893, %v960
      %962 = vmax.xlane.f32.xlu0 %v961
      %v963 = vpop.xlane.xlu0 %962
      %v964 = vsel %vm907, %v901, -inf
      %v965 = vmax.f32 %v899, %v964
      %966 = vmax.xlane.f32.xlu0 %v965
      %v967 = vpop.xlane.xlu0 %966
      %v968 = vsel %vm907, %v905, -inf
      %v969 = vmax.f32 %v903, %v968
      %970 = vmax.xlane.f32.xlu0 %v969
      %v971 = vpop.xlane.xlu0 %970
      %p972 = scmp.eq.s32.totalorder %s23, 0
      // Predicated region
      $region49: #{tpu_custom_call.1} parent=47 // pred_check
        %p973 = pneg %p972
      $region50: #{tpu_custom_call.1} parent=47 // pred_check_branch
        %975 = sbr.rel (%p973) target = $region52
      $region51: #{tpu_custom_call.1} parent=47 // pred_region
        %vm976 = vcmask 7168
        %977 = vst.msk [vmem:[#allocation2] sm:$0xff] %vm976, %v911
        %978 = vst.msk [vmem:[#allocation2 + $0x8] sm:$0xff] %vm976, %v915
        %979 = vst.msk [vmem:[#allocation2 + $0x10] sm:$0xff] %vm976, %v919
        %980 = vst.msk [vmem:[#allocation2 + $0x18] sm:$0xff] %vm976, %v923
        %981 = vst.msk [vmem:[#allocation2 + $0x20] sm:$0xff] %vm976, %v927
        %982 = vst.msk [vmem:[#allocation2 + $0x28] sm:$0xff] %vm976, %v931
        %983 = vst.msk [vmem:[#allocation2 + $0x30] sm:$0xff] %vm976, %v935
        %984 = vst.msk [vmem:[#allocation2 + $0x38] sm:$0xff] %vm976, %v939
        %985 = vst.msk [vmem:[#allocation2 + $0x40] sm:$0xff] %vm976, %v943
        %986 = vst.msk [vmem:[#allocation2 + $0x48] sm:$0xff] %vm976, %v947
        %987 = vst.msk [vmem:[#allocation2 + $0x50] sm:$0xff] %vm976, %v951
        %988 = vst.msk [vmem:[#allocation2 + $0x58] sm:$0xff] %vm976, %v955
        %989 = vst.msk [vmem:[#allocation2 + $0x60] sm:$0xff] %vm976, %v959
        %990 = vst.msk [vmem:[#allocation2 + $0x68] sm:$0xff] %vm976, %v963
        %991 = vst.msk [vmem:[#allocation2 + $0x70] sm:$0xff] %vm976, %v967
        %992 = vst.msk [vmem:[#allocation2 + $0x78] sm:$0xff] %vm976, %v971
      $region52: #{tpu_custom_call.1} parent=47 // pred_fallthru
        _
      %p993 = scmp.gt.s32.totalorder %s23, 0
      // Predicated region
      $region53: #{tpu_custom_call.1} parent=47 // pred_check
        %p994 = pneg %p993
      $region54: #{tpu_custom_call.1} parent=47 // pred_check_branch
        %996 = sbr.rel (%p994) target = $region56
      $region55: #{tpu_custom_call.1} parent=47 // pred_region
        %v997 = vld [vmem:[#allocation2] sm:$0xff]
        %v998 = vld [vmem:[#allocation2 + $0x8] sm:$0xff]
        %v999 = vld [vmem:[#allocation2 + $0x10] sm:$0xff]
        %v1000 = vld [vmem:[#allocation2 + $0x18] sm:$0xff]
        %v1001 = vld [vmem:[#allocation2 + $0x20] sm:$0xff]
        %v1002 = vld [vmem:[#allocation2 + $0x28] sm:$0xff]
        %v1003 = vld [vmem:[#allocation2 + $0x30] sm:$0xff]
        %v1004 = vld [vmem:[#allocation2 + $0x38] sm:$0xff]
        %v1005 = vld [vmem:[#allocation2 + $0x40] sm:$0xff]
        %v1006 = vld [vmem:[#allocation2 + $0x48] sm:$0xff]
        %v1007 = vld [vmem:[#allocation2 + $0x50] sm:$0xff]
        %v1008 = vld [vmem:[#allocation2 + $0x58] sm:$0xff]
        %v1009 = vld [vmem:[#allocation2 + $0x60] sm:$0xff]
        %v1010 = vld [vmem:[#allocation2 + $0x68] sm:$0xff]
        %v1011 = vld [vmem:[#allocation2 + $0x70] sm:$0xff]
        %v1012 = vld [vmem:[#allocation2 + $0x78] sm:$0xff]
        %v1013 = vmax.f32 %v997, %v911
        %v1014 = vmax.f32 %v998, %v915
        %v1015 = vmax.f32 %v999, %v919
        %v1016 = vmax.f32 %v1000, %v923
        %v1017 = vmax.f32 %v1001, %v927
        %v1018 = vmax.f32 %v1002, %v931
        %v1019 = vmax.f32 %v1003, %v935
        %v1020 = vmax.f32 %v1004, %v939
        %v1021 = vmax.f32 %v1005, %v943
        %v1022 = vmax.f32 %v1006, %v947
        %v1023 = vmax.f32 %v1007, %v951
        %v1024 = vmax.f32 %v1008, %v955
        %v1025 = vmax.f32 %v1009, %v959
        %v1026 = vmax.f32 %v1010, %v963
        %v1027 = vmax.f32 %v1011, %v967
        %v1028 = vmax.f32 %v1012, %v971
        %vm1029 = vcmask 7168
        %1030 = vst.msk [vmem:[#allocation2] sm:$0xff] %vm1029, %v1013
        %1031 = vst.msk [vmem:[#allocation2 + $0x8] sm:$0xff] %vm1029, %v1014
        %1032 = vst.msk [vmem:[#allocation2 + $0x10] sm:$0xff] %vm1029, %v1015
        %1033 = vst.msk [vmem:[#allocation2 + $0x18] sm:$0xff] %vm1029, %v1016
        %1034 = vst.msk [vmem:[#allocation2 + $0x20] sm:$0xff] %vm1029, %v1017
        %1035 = vst.msk [vmem:[#allocation2 + $0x28] sm:$0xff] %vm1029, %v1018
        %1036 = vst.msk [vmem:[#allocation2 + $0x30] sm:$0xff] %vm1029, %v1019
        %1037 = vst.msk [vmem:[#allocation2 + $0x38] sm:$0xff] %vm1029, %v1020
        %1038 = vst.msk [vmem:[#allocation2 + $0x40] sm:$0xff] %vm1029, %v1021
        %1039 = vst.msk [vmem:[#allocation2 + $0x48] sm:$0xff] %vm1029, %v1022
        %1040 = vst.msk [vmem:[#allocation2 + $0x50] sm:$0xff] %vm1029, %v1023
        %1041 = vst.msk [vmem:[#allocation2 + $0x58] sm:$0xff] %vm1029, %v1024
        %1042 = vst.msk [vmem:[#allocation2 + $0x60] sm:$0xff] %vm1029, %v1025
        %1043 = vst.msk [vmem:[#allocation2 + $0x68] sm:$0xff] %vm1029, %v1026
        %1044 = vst.msk [vmem:[#allocation2 + $0x70] sm:$0xff] %vm1029, %v1027
        %1045 = vst.msk [vmem:[#allocation2 + $0x78] sm:$0xff] %vm1029, %v1028
      $region56: #{tpu_custom_call.1} parent=47 // pred_fallthru
        _
      // Predicated region
      $region57: #{tpu_custom_call.1} parent=47 // pred_check
        %p1046 = pneg %p972
      $region58: #{tpu_custom_call.1} parent=47 // pred_check_branch
        %1048 = sbr.rel (%p1046) target = $region60
      $region59: #{tpu_custom_call.1} parent=47 // pred_region
        %v1049 = vld [vmem:[#allocation2] sm:$0xff]
        %v1050 = vld [vmem:[#allocation2 + $0x8] sm:$0xff]
        %v1051 = vld [vmem:[#allocation2 + $0x10] sm:$0xff]
        %v1052 = vld [vmem:[#allocation2 + $0x18] sm:$0xff]
        %v1053 = vld [vmem:[#allocation2 + $0x20] sm:$0xff]
        %v1054 = vld [vmem:[#allocation2 + $0x28] sm:$0xff]
        %v1055 = vld [vmem:[#allocation2 + $0x30] sm:$0xff]
        %v1056 = vld [vmem:[#allocation2 + $0x38] sm:$0xff]
        %v1057 = vld [vmem:[#allocation2 + $0x40] sm:$0xff]
        %v1058 = vld [vmem:[#allocation2 + $0x48] sm:$0xff]
        %v1059 = vld [vmem:[#allocation2 + $0x50] sm:$0xff]
        %v1060 = vld [vmem:[#allocation2 + $0x58] sm:$0xff]
        %v1061 = vld [vmem:[#allocation2 + $0x60] sm:$0xff]
        %v1062 = vld [vmem:[#allocation2 + $0x68] sm:$0xff]
        %v1063 = vld [vmem:[#allocation2 + $0x70] sm:$0xff]
        %v1064 = vld [vmem:[#allocation2 + $0x78] sm:$0xff]
        %vm1065 = vcmask 7168
        %1066 = vst.msk [vmem:[%s306] sm:$0xff] %vm1065, %v1049
        %1067 = vst.msk [vmem:[%s306 + $0x8] sm:$0xff] %vm1065, %v1050
        %1068 = vst.msk [vmem:[%s306 + $0x10] sm:$0xff] %vm1065, %v1051
        %1069 = vst.msk [vmem:[%s306 + $0x18] sm:$0xff] %vm1065, %v1052
        %1070 = vst.msk [vmem:[%s306 + $0x20] sm:$0xff] %vm1065, %v1053
        %1071 = vst.msk [vmem:[%s306 + $0x28] sm:$0xff] %vm1065, %v1054
        %1072 = vst.msk [vmem:[%s306 + $0x30] sm:$0xff] %vm1065, %v1055
        %1073 = vst.msk [vmem:[%s306 + $0x38] sm:$0xff] %vm1065, %v1056
        %1074 = vst.msk [vmem:[%s306 + $0x40] sm:$0xff] %vm1065, %v1057
        %1075 = vst.msk [vmem:[%s306 + $0x48] sm:$0xff] %vm1065, %v1058
        %1076 = vst.msk [vmem:[%s306 + $0x50] sm:$0xff] %vm1065, %v1059
        %1077 = vst.msk [vmem:[%s306 + $0x58] sm:$0xff] %vm1065, %v1060
        %1078 = vst.msk [vmem:[%s306 + $0x60] sm:$0xff] %vm1065, %v1061
        %1079 = vst.msk [vmem:[%s306 + $0x68] sm:$0xff] %vm1065, %v1062
        %1080 = vst.msk [vmem:[%s306 + $0x70] sm:$0xff] %vm1065, %v1063
        %1081 = vst.msk [vmem:[%s306 + $0x78] sm:$0xff] %vm1065, %v1064
      $region60: #{tpu_custom_call.1} parent=47 // pred_fallthru
        _
      %p1082 = scmp.lt.s32.totalorder %s22, 1
      %s1083 = scalar_select %p1082, %s22, 1
      %s1084 = smul.addr %s1083, 16
      %s1085 = smul.addr %s1084, 8
      %s1086 = scalar_lea.vmem %s7, %s1085
      // Predicated region
      $region61: #{tpu_custom_call.1} parent=47 // pred_check
        %p1087 = pneg %p202
      $region62: #{tpu_custom_call.1} parent=47 // pred_check_branch
        %1089 = sbr.rel (%p1087) target = $region64
      $region63: #{tpu_custom_call.1} parent=47 // pred_region
        _
      $region64: #{tpu_custom_call.1} parent=47 // pred_fallthru
        _
    $region48: #{tpu_custom_call.1} parent=5 // pred_fallthru
      _
    %p1090 = scmp.le.s32.totalorder 2, %s13
    // Predicated region
    $region65: #{tpu_custom_call.1} parent=5 // pred_check
      %p1091 = pneg %p1090
    $region66: #{tpu_custom_call.1} parent=5 // pred_check_branch
      %1093 = sbr.rel (%p1091) target = $region68
    $region67: #{tpu_custom_call.1} parent=5 // pred_region
      %s1094 = ssub.s32 %s13, 2
      // Predicated region
      $region69: #{tpu_custom_call.1} parent=67 // pred_check
        %p1095 = pneg %p208
      $region70: #{tpu_custom_call.1} parent=67 // pred_check_branch
        %1097 = sbr.rel (%p1095) target = $region72
      $region71: #{tpu_custom_call.1} parent=67 // pred_region
        %p1098 = scmp.lt.s32.totalorder %s24, 1
        %s1099 = scalar_select %p1098, %s24, 1
        %s1100 = smul.addr %s1099, 16
        %s1101 = smul.addr %s1100, 8
        %s1102 = scalar_lea.vmem %s7, %s1101
      $region72: #{tpu_custom_call.1} parent=67 // pred_fallthru
        _
    $region68: #{tpu_custom_call.1} parent=5 // pred_fallthru
      _
  $region6: #{tpu_custom_call.1} parent=0 // loop_footer
    %s17 = sadd.s32 1, %s13
  $region7: #{tpu_custom_call.1} parent=0 // loop_footer_branch
    %12 = sbr.rel target = $region3
  $region8: #{tpu_custom_call.1} parent=0 // loop_exit
    _

</llo_original>
